<compile_context>
chip_gen: v7x
topology: tpu7x:2x2x1
jax: 0.10.0
libtpu: 0.0.40
codegen_flags: <defaults>
</compile_context>

<pallas_src>
import jax
import jax.numpy as jnp
from jax.experimental import pallas as pl
from jax.experimental.pallas import tpu as pltpu


def _round_up(x, m):
    return (x + m - 1) // m * m


# ---------------------------------------------------------------------------
# Kernels
# ---------------------------------------------------------------------------
def _residual_linear_kernel(x_ref, w_ref, b_ref, o_ref):
    """out = (x @ W + b) + x for one token tile, full hidden width."""
    x = x_ref[...]                                        # (TM, D) f32
    fn_x = jnp.dot(x.astype(jnp.bfloat16), w_ref[...],    # bf16 MXU inputs
                   preferred_element_type=jnp.float32)    # f32 accumulation
    # bias + residual in f32, single cast at the end
    o_ref[...] = (fn_x + b_ref[...] + x).astype(o_ref.dtype)


def _residual_linear_tiled_kernel(xk_ref, xr_ref, w_ref, b_ref, o_ref, acc_ref):
    """K/N-tiled variant for hidden sizes whose weight can't stay VMEM-resident."""
    k = pl.program_id(2)

    @pl.when(k == 0)
    def _():
        acc_ref[...] = jnp.zeros_like(acc_ref)

    acc_ref[...] += jnp.dot(xk_ref[...].astype(jnp.bfloat16), w_ref[...],
                            preferred_element_type=jnp.float32)

    @pl.when(k == pl.num_programs(2) - 1)
    def _():
        o_ref[...] = (acc_ref[...] + b_ref[...] + xr_ref[...]).astype(o_ref.dtype)


# ---------------------------------------------------------------------------
# Wrappers
# ---------------------------------------------------------------------------
def prepare_params(w, b):
    """One-time weight/bias preparation (hoisted out of the per-call hot path)."""
    return w.astype(jnp.bfloat16), b.reshape(1, -1).astype(jnp.float32)


def _vmem_budget():
    try:
        cap = pltpu.get_tpu_info().vmem_capacity_bytes
    except Exception:
        cap = 64 * 1024 * 1024                      # conservative (v7x per-TC)
    limit = min(96 * 1024 * 1024, (cap * 3) // 4)   # ~48 MiB v7x, 96 MiB v5e/v6e
    return limit, (limit * 4) // 5                  # ~20% headroom for compiler scratch


def residual_add(x, w_bf16, b_row, *, out_dtype=None, force_tiled=False):
    """out = (x @ W + b) + x.  x: (B, S, D); W/b prepared via prepare_params()."""
    B, S, D = x.shape
    M = B * S
    out_dtype = x.dtype if out_dtype is None else out_dtype
    out_bytes = jnp.dtype(out_dtype).itemsize

    w_bf16 = w_bf16.astype(jnp.bfloat16)            # no-op if already prepared
    b_row = b_row.reshape(1, D).astype(jnp.float32)
    x2d = x.reshape(M, D)                           # free: no data movement

    vmem_limit, budget = _vmem_budget()

    # Per-token-row VMEM bytes: double-buffered f32 input tile + double-buffered
    # output tile; the bf16 weight and the bias are single-buffered residents.
    row_bytes = (2 * 4 + 2 * out_bytes) * D
    resident_bytes = 2 * D * D + 4 * D
    fits_resident = (budget - resident_bytes) >= 128 * row_bytes

    # ------------------------ path A: resident weight ------------------------
    if fits_resident and not force_tiled:
        tm = ((budget - resident_bytes) // row_bytes) // 128 * 128
        tm = max(128, min(tm, 2048))
        if M > 256:                        # guarantee >=2 grid steps (v7x megacore)
            tm = min(tm, _round_up(pl.cdiv(M, 2), 128))
        tm = min(tm, _round_up(M, 8))      # don't exceed the token count

        def build(single_buffer_consts):
            const_kw = ({"pipeline_mode": pl.Buffered(1)}
                        if single_buffer_consts else {})
            return pl.pallas_call(
                _residual_linear_kernel,
                out_shape=jax.ShapeDtypeStruct((M, D), out_dtype),
                grid=(pl.cdiv(M, tm),),
                in_specs=[
                    pl.BlockSpec((tm, D), lambda i: (i, 0)),            # x tile
                    pl.BlockSpec((D, D), lambda i: (0, 0), **const_kw),  # resident W
                    pl.BlockSpec((1, D), lambda i: (0, 0), **const_kw),  # resident b
                ],
                out_specs=pl.BlockSpec((tm, D), lambda i: (i, 0)),
                compiler_params=pltpu.CompilerParams(
                    dimension_semantics=("parallel",),
                    vmem_limit_bytes=vmem_limit,
                ),
            )

        try:
            out2d = build(True)(x2d, w_bf16, b_row)
        except Exception:
            # Fallback for toolchains that reject Buffered(1); identical math.
            out2d = build(False)(x2d, w_bf16, b_row)
        return out2d.reshape(B, S, D)

    # --------------------- path B: K/N-tiled weight --------------------------
    D_pad = _round_up(D, 128)
    if D_pad != D:
        # TODO(synk): fold this pad into prepare_params / an upstream op so it
        # is not re-done per call for non-128-aligned large hidden sizes.
        x2d = jnp.pad(x2d, ((0, 0), (0, D_pad - D)))
        w_bf16 = jnp.pad(w_bf16, ((0, D_pad - D), (0, D_pad - D)))
        b_row = jnp.pad(b_row, ((0, 0), (0, D_pad - D)))

    tk = 512 if D_pad % 512 == 0 else (256 if D_pad % 256 == 0 else 128)
    tn = tk
    tm = min(512, _round_up(M, 8))

    out2d = pl.pallas_call(
        _residual_linear_tiled_kernel,
        out_shape=jax.ShapeDtypeStruct((M, D_pad), out_dtype),
        grid=(pl.cdiv(M, tm), D_pad // tn, D_pad // tk),
        in_specs=[
            pl.BlockSpec((tm, tk), lambda i, j, k: (i, k)),   # x slab for matmul
            pl.BlockSpec((tm, tn), lambda i, j, k: (i, j)),   # x slab for residual
            pl.BlockSpec((tk, tn), lambda i, j, k: (k, j)),   # weight tile
            pl.BlockSpec((1, tn), lambda i, j, k: (0, j)),    # bias tile
        ],
        out_specs=pl.BlockSpec((tm, tn), lambda i, j, k: (i, j)),
        scratch_shapes=[pltpu.VMEM((tm, tn), jnp.float32)],
        compiler_params=pltpu.CompilerParams(
            dimension_semantics=("parallel", "parallel", "arbitrary"),
            vmem_limit_bytes=vmem_limit,
        ),
    )(x2d, x2d, w_bf16, b_row)

    if D_pad != D:
        out2d = out2d[:, :D]
    return out2d.reshape(B, S, D)


if __name__ == "__main__":
    key = jax.random.PRNGKey(0)
    k_x, k_w, k_b, k_x2, k_w2, k_b2 = jax.random.split(key, 6)

    # --- small ViT-like shapes: fused resident-weight path ------------------
    B, S, D = 2, 8, 32
    x = jax.random.uniform(k_x, (B, S, D), dtype=jnp.float32)
    w = jax.random.normal(k_w, (D, D), dtype=jnp.float32) * 0.02
    b = jax.random.normal(k_b, (D,), dtype=jnp.float32) * 0.02
    w_p, b_p = prepare_params(w, b)

    out = residual_add(x, w_p, b_p)
    jax.block_until_ready(out)

    # Reference matching the kernel numerics (bf16 matmul inputs, f32 accum,
    # f32 bias + residual).
    xb = x.astype(jnp.bfloat16).astype(jnp.float32)
    wb = w.astype(jnp.bfloat16).astype(jnp.float32)
    ref = xb @ wb + b + x
    assert out.shape == x.shape and out.dtype == x.dtype
    assert jnp.allclose(out, ref, atol=1e-4, rtol=1e-4), "mismatch vs bf16 reference"
    assert jnp.allclose(out, x @ w + b + x, atol=5e-2, rtol=5e-2), "mismatch vs f32 reference"

    # --- exercise the K/N-tiled fallback (used for large hidden sizes) ------
    B2, S2, D2 = 2, 128, 384
    x2 = jax.random.uniform(k_x2, (B2, S2, D2), dtype=jnp.float32)
    w2 = jax.random.normal(k_w2, (D2, D2), dtype=jnp.float32) * 0.02
    b2 = jax.random.normal(k_b2, (D2,), dtype=jnp.float32) * 0.02
    w2_p, b2_p = prepare_params(w2, b2)

    out2 = residual_add(x2, w2_p, b2_p, force_tiled=True)
    jax.block_until_ready(out2)

    xb2 = x2.astype(jnp.bfloat16).astype(jnp.float32)
    wb2 = w2.astype(jnp.bfloat16).astype(jnp.float32)
    ref2 = xb2 @ wb2 + b2 + x2
    assert jnp.allclose(out2, ref2, atol=1e-3, rtol=1e-3), "mismatch vs bf16 reference (tiled)"

    print("KERNEL_OK")
</pallas_src>

<mosaic_0001>
module attributes {stable_mosaic.version = 11 : i64} {
  func.func @_residual_linear_kernel(%arg0: i32, %arg1: memref<16x32xf32, #tpu.memory_space<vmem>>, %arg2: memref<32x32xbf16, #tpu.memory_space<vmem>>, %arg3: memref<1x32xf32, #tpu.memory_space<vmem>>, %arg4: memref<16x32xf32, #tpu.memory_space<vmem>>) attributes {dimension_semantics = [#tpu.dimension_semantics<parallel>], iteration_bounds = array<i64: 1>, scalar_prefetch = 0 : i64, scratch_operands = 0 : i64, tpu.core_type = #tpu.core_type<tc>, window_params = [{transform_indices = @transform_0, window_bounds = array<i64: 16, 32>}, {pipeline_mode = #tpu.pipeline_mode<synchronous>, transform_indices = @transform_1, window_bounds = array<i64: 32, 32>}, {pipeline_mode = #tpu.pipeline_mode<synchronous>, transform_indices = @transform_2, window_bounds = array<i64: 1, 32>}, {transform_indices = @transform_3, window_bounds = array<i64: 16, 32>}]} {
    %c0 = arith.constant 0 : index
    %c0_0 = arith.constant 0 : index
    %0 = vector.load %arg1[%c0, %c0_0] : memref<16x32xf32, #tpu.memory_space<vmem>>, vector<16x32xf32>
    %1 = arith.truncf %0 : vector<16x32xf32> to vector<16x32xbf16>
    %c0_1 = arith.constant 0 : index
    %c0_2 = arith.constant 0 : index
    %2 = vector.load %arg2[%c0_1, %c0_2] : memref<32x32xbf16, #tpu.memory_space<vmem>>, vector<32x32xbf16>
    %cst = arith.constant dense<0.000000e+00> : vector<16x32xf32>
    %3 = tpu.matmul %1, %2, %cst {dimension_numbers = #tpu.dot_dimension_numbers<[1], [0], [0], [1], [0, 0, 1, 1], [], []>} : vector<16x32xbf16>, vector<32x32xbf16>, vector<16x32xf32> -> vector<16x32xf32>
    %c0_3 = arith.constant 0 : index
    %c0_4 = arith.constant 0 : index
    %4 = vector.load %arg3[%c0_3, %c0_4] : memref<1x32xf32, #tpu.memory_space<vmem>>, vector<1x32xf32>
    %5 = vector.broadcast %4 : vector<1x32xf32> to vector<16x32xf32>
    %6 = arith.addf %3, %5 : vector<16x32xf32>
    %7 = arith.addf %6, %0 : vector<16x32xf32>
    %c0_5 = arith.constant 0 : index
    %c0_6 = arith.constant 0 : index
    %8 = vector.load %arg4[%c0_5, %c0_6] : memref<16x32xf32, #tpu.memory_space<vmem>>, vector<16x32xf32>
    tpu.vector_store %arg4[%c0_5, %c0_6], %7 {strides = array<i32>} : memref<16x32xf32, #tpu.memory_space<vmem>>, vector<16x32xf32>,
    return
  }
  func.func @transform_0(%arg0: i32) -> (i32, i32) {
    %c0_i32 = arith.constant 0 : i32
    %c0_i32_0 = arith.constant 0 : i32
    return %arg0, %c0_i32 : i32, i32
  }
  func.func @transform_1(%arg0: i32) -> (i32, i32) {
    %c0_i32 = arith.constant 0 : i32
    %c0_i32_0 = arith.constant 0 : i32
    %c0_i32_1 = arith.constant 0 : i32
    return %c0_i32, %c0_i32_0 : i32, i32
  }
  func.func @transform_2(%arg0: i32) -> (i32, i32) {
    %c0_i32 = arith.constant 0 : i32
    %c0_i32_0 = arith.constant 0 : i32
    %c0_i32_1 = arith.constant 0 : i32
    return %c0_i32, %c0_i32_0 : i32, i32
  }
  func.func @transform_3(%arg0: i32) -> (i32, i32) {
    %c0_i32 = arith.constant 0 : i32
    %c0_i32_0 = arith.constant 0 : i32
    return %arg0, %c0_i32 : i32, i32
  }
}

module attributes {stable_mosaic.version = 11 : i64} {
  func.func @_residual_linear_kernel(%arg0: i32, %arg1: memref<16x32xf32, #tpu.memory_space<vmem>>, %arg2: memref<32x32xbf16, #tpu.memory_space<vmem>>, %arg3: memref<1x32xf32, #tpu.memory_space<vmem>>, %arg4: memref<16x32xf32, #tpu.memory_space<vmem>>) attributes {dimension_semantics = [#tpu.dimension_semantics<parallel>], iteration_bounds = array<i64: 1>, scalar_prefetch = 0 : i64, scratch_operands = 0 : i64, tpu.core_type = #tpu.core_type<tc>, window_params = [{transform_indices = @transform_0, window_bounds = array<i64: 16, 32>}, {pipeline_mode = #tpu.pipeline_mode<synchronous>, transform_indices = @transform_1, window_bounds = array<i64: 32, 32>}, {pipeline_mode = #tpu.pipeline_mode<synchronous>, transform_indices = @transform_2, window_bounds = array<i64: 1, 32>}, {transform_indices = @transform_3, window_bounds = array<i64: 16, 32>}]} {
    %c0 = arith.constant 0 : index
    %c0_0 = arith.constant 0 : index
    %0 = vector.load %arg1[%c0, %c0_0] : memref<16x32xf32, #tpu.memory_space<vmem>>, vector<16x32xf32>
    %1 = arith.truncf %0 : vector<16x32xf32> to vector<16x32xbf16>
    %c0_1 = arith.constant 0 : index
    %c0_2 = arith.constant 0 : index
    %2 = vector.load %arg2[%c0_1, %c0_2] : memref<32x32xbf16, #tpu.memory_space<vmem>>, vector<32x32xbf16>
    %cst = arith.constant dense<0.000000e+00> : vector<16x32xf32>
    %3 = tpu.matmul %1, %2, %cst {dimension_numbers = #tpu.dot_dimension_numbers<[1], [0], [0], [1], [0, 0, 1, 1], [], []>} : vector<16x32xbf16>, vector<32x32xbf16>, vector<16x32xf32> -> vector<16x32xf32>
    %c0_3 = arith.constant 0 : index
    %c0_4 = arith.constant 0 : index
    %4 = vector.load %arg3[%c0_3, %c0_4] : memref<1x32xf32, #tpu.memory_space<vmem>>, vector<1x32xf32>
    %5 = vector.broadcast %4 : vector<1x32xf32> to vector<16x32xf32>
    %6 = arith.addf %3, %5 : vector<16x32xf32>
    %7 = arith.addf %6, %0 : vector<16x32xf32>
    %c0_5 = arith.constant 0 : index
    %c0_6 = arith.constant 0 : index
    %8 = vector.load %arg4[%c0_5, %c0_6] : memref<16x32xf32, #tpu.memory_space<vmem>>, vector<16x32xf32>
    tpu.vector_store %arg4[%c0_5, %c0_6], %7 {strides = array<i32>} : memref<16x32xf32, #tpu.memory_space<vmem>>, vector<16x32xf32>,
    return
  }
  func.func @transform_0(%arg0: i32) -> (i32, i32) {
    %c0_i32 = arith.constant 0 : i32
    %c0_i32_0 = arith.constant 0 : i32
    return %arg0, %c0_i32 : i32, i32
  }
  func.func @transform_1(%arg0: i32) -> (i32, i32) {
    %c0_i32 = arith.constant 0 : i32
    %c0_i32_0 = arith.constant 0 : i32
    %c0_i32_1 = arith.constant 0 : i32
    return %c0_i32, %c0_i32_0 : i32, i32
  }
  func.func @transform_2(%arg0: i32) -> (i32, i32) {
    %c0_i32 = arith.constant 0 : i32
    %c0_i32_0 = arith.constant 0 : i32
    %c0_i32_1 = arith.constant 0 : i32
    return %c0_i32, %c0_i32_0 : i32, i32
  }
  func.func @transform_3(%arg0: i32) -> (i32, i32) {
    %c0_i32 = arith.constant 0 : i32
    %c0_i32_0 = arith.constant 0 : i32
    return %arg0, %c0_i32 : i32, i32
  }
}

</mosaic_0001>

<llo_original>
// kernel: tpu_custom_call.1
$region0: #{tpu_custom_call.1}
  #allocation0 [shape = 'u32[]', space=smem, size = 0x4, offset = 0x4, fixed_abs, tag = 'smem constant byte address 0x4 - core index']
  #allocation1 [shape = 'u32[144,128]{1,0:T(1,128)}', space=vmem, size = 0x12000, scoped, tag = 'internal scratch']
  %s0 = inlined_call_operand.hbm [shape: f32[16,32], index: 0, kind: input, shape index: {}]
  %s1 = inlined_call_operand.hbm [shape: bf16[32,32], index: 1, kind: input, shape index: {}]
  %s2 = inlined_call_operand.vmem [shape: f32[1,32], index: 2, kind: input, shape index: {}]
  %s3 = inlined_call_operand.hbm [shape: f32[16,32], index: 3, kind: output, shape index: {}]
  %s4 = sld [smem:[#allocation0]]
  $region30: #{tpu_custom_call.1} parent=0
    _
  %s6 = ssub.s32 1, %s4
  %s7 = scalar_select 0, %s6, %s4
  $region1: #{tpu_custom_call.1} parent=0
    #allocation2 [shape = 'u8[8192]{0}', space=vmem, size = 0x2000, scoped, tag = 'input window, operand 0, single buffered']
    #allocation3 [shape = 's32[1]{0}', space=sflag, size = 0x4, scoped, tag = 'scoped memory for tpu_custom_call.1']
    #allocation4 [shape = 's32[1]{0}', space=sflag, size = 0x4, scoped, tag = 'scoped memory for tpu_custom_call.1']
    #allocation5 [shape = 'u8[8192]{0}', space=vmem, size = 0x2000, scoped, tag = 'input window, operand 1, single buffered']
    #allocation6 [shape = 's32[1]{0}', space=sflag, size = 0x4, scoped, tag = 'scoped memory for tpu_custom_call.1']
    #allocation7 [shape = 'u8[8192]{0}', space=vmem, size = 0x2000, scoped, tag = 'output window, operand 0, single buffered']
    %8 = vsyncpa [#allocation3], 0
    %9 = vsyncpa [#allocation6], 0
    %10 = vsyncpa [#allocation4], 0
    // Predicated region
    $region2: #{tpu_custom_call.1} parent=1 // pred_check
      _
    $region3: #{tpu_custom_call.1} parent=1 // pred_check_branch
      %12 = sbr.rel (0) target = $region5
    $region4: #{tpu_custom_call.1} parent=1 // pred_region
      %s14 = ssub.s32 256, 256
      %15 = vsyncadd [#allocation3], %s14
      %s16 = sshll.u32 [#allocation2], 4
      %s17 = int_to_ptr.vmem [resolvable:$true] %s16
      %22 = dma.hbm_to_vmem [thread:$0]  %s0, 256, %s17, [#allocation3], 128, 128, 8
    $region5: #{tpu_custom_call.1} parent=1 // pred_fallthru
      _
    // Predicated region
    $region6: #{tpu_custom_call.1} parent=1 // pred_check
      _
    $region7: #{tpu_custom_call.1} parent=1 // pred_check_branch
      %24 = sbr.rel (0) target = $region9
    $region8: #{tpu_custom_call.1} parent=1 // pred_region
      %s26 = ssub.s32 256, 256
      %27 = vsyncadd [#allocation6], %s26
      %s28 = sshll.u32 [#allocation5], 4
      %s29 = int_to_ptr.vmem [resolvable:$true] %s28
      %34 = dma.hbm_to_vmem [thread:$0]  %s1, 256, %s29, [#allocation6], 64, 64, 4
    $region9: #{tpu_custom_call.1} parent=1 // pred_fallthru
      _
    // Predicated region
    $region10: #{tpu_custom_call.1} parent=1 // pred_check
      _
    $region11: #{tpu_custom_call.1} parent=1 // pred_check_branch
      %36 = sbr.rel (0) target = $region13
    $region12: #{tpu_custom_call.1} parent=1 // pred_region
      _
    $region13: #{tpu_custom_call.1} parent=1 // pred_fallthru
      _
    // Predicated region
    $region14: #{tpu_custom_call.1} parent=1 // pred_check
      _
    $region15: #{tpu_custom_call.1} parent=1 // pred_check_branch
      %38 = sbr.rel (0) target = $region17
    $region16: #{tpu_custom_call.1} parent=1 // pred_region
      %39 = dma.done [#allocation3], 256
    $region17: #{tpu_custom_call.1} parent=1 // pred_fallthru
      _
    // Predicated region
    $region18: #{tpu_custom_call.1} parent=1 // pred_check
      _
    $region19: #{tpu_custom_call.1} parent=1 // pred_check_branch
      %41 = sbr.rel (0) target = $region21
    $region20: #{tpu_custom_call.1} parent=1 // pred_region
      %42 = dma.done [#allocation6], 256
    $region21: #{tpu_custom_call.1} parent=1 // pred_fallthru
      _
    %v44 = vld [vmem:[#allocation2] sm:$0xff]
    %v45 = vld [vmem:[#allocation2 + $0x8] sm:$0xff]
    %v46 = vpack.c.bf16 %v45, %v44
    %v47 = vld [vmem:[#allocation5] sm:$0xf]
    %v48 = vld [vmem:[#allocation5 + $0x4] sm:$0xf]
    %v49 = vld [vmem:[#allocation5 + $0x8] sm:$0xf]
    %v50 = vld [vmem:[#allocation5 + $0xc] sm:$0xf]
    %v51 = vld [vmem:[%s2] sm:$0x1]
    %v53 = vlaneseq
    %v54 = vshrl.u32 %v53, 7
    %v55 = vsub.s32 0, %v54
    %v56 = vrot.slane %v51, %v55
    %v62 = vunpack.c.l.b16 %v47
    %v63 = vunpack.c.l.b16 %v48
    %v64 = vunpack.c.l.b16 %v49
    %v65 = vunpack.c.l.b16 %v50
    %v66 = vpack.c.b16 %v63, %v62
    %v67 = vpack.c.b16 %v65, %v64
    %vm70 = vcmask 261120
    %v72 = vsel %vm70, %v46, 0
    %74 = vmatprep.subr.bf16.mxu0 0
    %75 = vmatpush1.bf16.msra.mxu0 %v66
    %76 = vmatprep.subr.bf16.mxu0 0
    %77 = vmatpush1.bf16.msra.mxu0 %v67
    %78 = vmatprep.subr.bf16.mxu0 0
    %79 = vmatpush1.bf16.msra.mxu0 0
    %80 = vmatprep.subr.bf16.mxu0 0
    %81 = vmatpush1.bf16.msra.mxu0 0
    %82 = vmatprep.subr.bf16.mxu0 0
    %83 = vmatpush1.bf16.msra.mxu0 0
    %84 = vmatprep.subr.bf16.mxu0 0
    %85 = vmatpush1.bf16.msra.mxu0 0
    %86 = vmatprep.subr.bf16.mxu0 0
    %87 = vmatpush1.bf16.msra.mxu0 0
    %88 = vmatprep.subr.bf16.mxu0 0
    %89 = vmatpush1.bf16.msra.mxu0 0
    %90 = vmatprep.subr.bf16.mxu0 0
    %91 = vmatpush1.bf16.msra.mxu0 0
    %92 = vmatprep.subr.bf16.mxu0 0
    %93 = vmatpush1.bf16.msra.mxu0 0
    %94 = vmatprep.subr.bf16.mxu0 0
    %95 = vmatpush1.bf16.msra.mxu0 0
    %96 = vmatprep.subr.bf16.mxu0 0
    %97 = vmatpush1.bf16.msra.mxu0 0
    %98 = vmatprep.subr.bf16.mxu0 0
    %99 = vmatpush1.bf16.msra.mxu0 0
    %100 = vmatprep.subr.bf16.mxu0 0
    %101 = vmatpush1.bf16.msra.mxu0 0
    %102 = vmatprep.subr.bf16.mxu0 0
    %103 = vmatpush1.bf16.msra.mxu0 0
    %104 = vmatprep.subr.bf16.mxu0 0
    %105 = vmatpush1.bf16.msra.mxu0 0
    %106 = vmatprep.mubr.bf16.mxu0 0
    %107 = vmatmul.mubr.bf16.gmra.mrb[0].mxu0 %v72
    %v108 = vpop.f32.mrb[0].mxu0
    %v109 = vadd.f32 %v56, %v108
    %v110 = vpop.f32.mrb[0].mxu0
    %v111 = vpop.f32.mrb[0].mxu0
    %v112 = vadd.f32 %v56, %v111
    %v113 = vpop.f32.mrb[0].mxu0
    %114 = vdwg.mxu0
    %v115 = vadd.f32 %v109, %v44
    %v116 = vadd.f32 %v112, %v45
    %117 = vst.msk [vmem:[#allocation7] sm:$0xff] %vm70, %v115
    %118 = vst.msk [vmem:[#allocation7 + $0x8] sm:$0xff] %vm70, %v116
    // Predicated region
    $region22: #{tpu_custom_call.1} parent=1 // pred_check
      _
    $region23: #{tpu_custom_call.1} parent=1 // pred_check_branch
      %120 = sbr.rel (0) target = $region25
    $region24: #{tpu_custom_call.1} parent=1 // pred_region
      %s122 = ssub.s32 256, 256
      %123 = vsyncadd [#allocation4], %s122
      %s124 = sshll.u32 [#allocation7], 4
      %s125 = int_to_ptr.vmem [resolvable:$true] %s124
      %130 = dma.vmem_to_hbm [thread:$0]  %s125, 256, %s3, [#allocation4], 128, 128, 8
    $region25: #{tpu_custom_call.1} parent=1 // pred_fallthru
      _
    // Predicated region
    $region26: #{tpu_custom_call.1} parent=1 // pred_check
      _
    $region27: #{tpu_custom_call.1} parent=1 // pred_check_branch
      %132 = sbr.rel (0) target = $region29
    $region28: #{tpu_custom_call.1} parent=1 // pred_region
      %133 = dma.done [#allocation4], 256
    $region29: #{tpu_custom_call.1} parent=1 // pred_fallthru
      _
    %134 = vsyncpa [#allocation3], 1
    %135 = vsyncpa [#allocation6], 1
    %136 = vsyncpa [#allocation4], 1

// kernel: tpu_custom_call.1
$region0: #{tpu_custom_call.1}
  #allocation0 [shape = 'u32[]', space=smem, size = 0x4, offset = 0x4, fixed_abs, tag = 'smem constant byte address 0x4 - core index']
  #allocation1 [shape = 'u32[144,128]{1,0:T(1,128)}', space=vmem, size = 0x12000, scoped, tag = 'internal scratch']
  %s0 = inlined_call_operand.hbm [shape: f32[16,32], index: 0, kind: input, shape index: {}]
  %s1 = inlined_call_operand.hbm [shape: bf16[32,32], index: 1, kind: input, shape index: {}]
  %s2 = inlined_call_operand.vmem [shape: f32[1,32], index: 2, kind: input, shape index: {}]
  %s3 = inlined_call_operand.hbm [shape: f32[16,32], index: 3, kind: output, shape index: {}]
  %s4 = sld [smem:[#allocation0]]
  $region30: #{tpu_custom_call.1} parent=0
    _
  %s6 = ssub.s32 1, %s4
  %s7 = scalar_select 0, %s6, %s4
  $region1: #{tpu_custom_call.1} parent=0
    #allocation2 [shape = 'u8[8192]{0}', space=vmem, size = 0x2000, scoped, tag = 'input window, operand 0, single buffered']
    #allocation3 [shape = 's32[1]{0}', space=sflag, size = 0x4, scoped, tag = 'scoped memory for tpu_custom_call.1']
    #allocation4 [shape = 's32[1]{0}', space=sflag, size = 0x4, scoped, tag = 'scoped memory for tpu_custom_call.1']
    #allocation5 [shape = 'u8[8192]{0}', space=vmem, size = 0x2000, scoped, tag = 'input window, operand 1, single buffered']
    #allocation6 [shape = 's32[1]{0}', space=sflag, size = 0x4, scoped, tag = 'scoped memory for tpu_custom_call.1']
    #allocation7 [shape = 'u8[8192]{0}', space=vmem, size = 0x2000, scoped, tag = 'output window, operand 0, single buffered']
    %8 = vsyncpa [#allocation3], 0
    %9 = vsyncpa [#allocation6], 0
    %10 = vsyncpa [#allocation4], 0
    // Predicated region
    $region2: #{tpu_custom_call.1} parent=1 // pred_check
      _
    $region3: #{tpu_custom_call.1} parent=1 // pred_check_branch
      %12 = sbr.rel (0) target = $region5
    $region4: #{tpu_custom_call.1} parent=1 // pred_region
      %s14 = ssub.s32 256, 256
      %15 = vsyncadd [#allocation3], %s14
      %s16 = sshll.u32 [#allocation2], 4
      %s17 = int_to_ptr.vmem [resolvable:$true] %s16
      %22 = dma.hbm_to_vmem [thread:$0]  %s0, 256, %s17, [#allocation3], 128, 128, 8
    $region5: #{tpu_custom_call.1} parent=1 // pred_fallthru
      _
    // Predicated region
    $region6: #{tpu_custom_call.1} parent=1 // pred_check
      _
    $region7: #{tpu_custom_call.1} parent=1 // pred_check_branch
      %24 = sbr.rel (0) target = $region9
    $region8: #{tpu_custom_call.1} parent=1 // pred_region
      %s26 = ssub.s32 256, 256
      %27 = vsyncadd [#allocation6], %s26
      %s28 = sshll.u32 [#allocation5], 4
      %s29 = int_to_ptr.vmem [resolvable:$true] %s28
      %34 = dma.hbm_to_vmem [thread:$0]  %s1, 256, %s29, [#allocation6], 64, 64, 4
    $region9: #{tpu_custom_call.1} parent=1 // pred_fallthru
      _
    // Predicated region
    $region10: #{tpu_custom_call.1} parent=1 // pred_check
      _
    $region11: #{tpu_custom_call.1} parent=1 // pred_check_branch
      %36 = sbr.rel (0) target = $region13
    $region12: #{tpu_custom_call.1} parent=1 // pred_region
      _
    $region13: #{tpu_custom_call.1} parent=1 // pred_fallthru
      _
    // Predicated region
    $region14: #{tpu_custom_call.1} parent=1 // pred_check
      _
    $region15: #{tpu_custom_call.1} parent=1 // pred_check_branch
      %38 = sbr.rel (0) target = $region17
    $region16: #{tpu_custom_call.1} parent=1 // pred_region
      %39 = dma.done [#allocation3], 256
    $region17: #{tpu_custom_call.1} parent=1 // pred_fallthru
      _
    // Predicated region
    $region18: #{tpu_custom_call.1} parent=1 // pred_check
      _
    $region19: #{tpu_custom_call.1} parent=1 // pred_check_branch
      %41 = sbr.rel (0) target = $region21
    $region20: #{tpu_custom_call.1} parent=1 // pred_region
      %42 = dma.done [#allocation6], 256
    $region21: #{tpu_custom_call.1} parent=1 // pred_fallthru
      _
    %v44 = vld [vmem:[#allocation2] sm:$0xff]
    %v45 = vld [vmem:[#allocation2 + $0x8] sm:$0xff]
    %v46 = vpack.c.bf16 %v45, %v44
    %v47 = vld [vmem:[#allocation5] sm:$0xf]
    %v48 = vld [vmem:[#allocation5 + $0x4] sm:$0xf]
    %v49 = vld [vmem:[#allocation5 + $0x8] sm:$0xf]
    %v50 = vld [vmem:[#allocation5 + $0xc] sm:$0xf]
    %v51 = vld [vmem:[%s2] sm:$0x1]
    %v53 = vlaneseq
    %v54 = vshrl.u32 %v53, 7
    %v55 = vsub.s32 0, %v54
    %v56 = vrot.slane %v51, %v55
    %v62 = vunpack.c.l.b16 %v47
    %v63 = vunpack.c.l.b16 %v48
    %v64 = vunpack.c.l.b16 %v49
    %v65 = vunpack.c.l.b16 %v50
    %v66 = vpack.c.b16 %v63, %v62
    %v67 = vpack.c.b16 %v65, %v64
    %vm70 = vcmask 261120
    %v72 = vsel %vm70, %v46, 0
    %74 = vmatprep.subr.bf16.mxu0 0
    %75 = vmatpush1.bf16.msra.mxu0 %v66
    %76 = vmatprep.subr.bf16.mxu0 0
    %77 = vmatpush1.bf16.msra.mxu0 %v67
    %78 = vmatprep.subr.bf16.mxu0 0
    %79 = vmatpush1.bf16.msra.mxu0 0
    %80 = vmatprep.subr.bf16.mxu0 0
    %81 = vmatpush1.bf16.msra.mxu0 0
    %82 = vmatprep.subr.bf16.mxu0 0
    %83 = vmatpush1.bf16.msra.mxu0 0
    %84 = vmatprep.subr.bf16.mxu0 0
    %85 = vmatpush1.bf16.msra.mxu0 0
    %86 = vmatprep.subr.bf16.mxu0 0
    %87 = vmatpush1.bf16.msra.mxu0 0
    %88 = vmatprep.subr.bf16.mxu0 0
    %89 = vmatpush1.bf16.msra.mxu0 0
    %90 = vmatprep.subr.bf16.mxu0 0
    %91 = vmatpush1.bf16.msra.mxu0 0
    %92 = vmatprep.subr.bf16.mxu0 0
    %93 = vmatpush1.bf16.msra.mxu0 0
    %94 = vmatprep.subr.bf16.mxu0 0
    %95 = vmatpush1.bf16.msra.mxu0 0
    %96 = vmatprep.subr.bf16.mxu0 0
    %97 = vmatpush1.bf16.msra.mxu0 0
    %98 = vmatprep.subr.bf16.mxu0 0
    %99 = vmatpush1.bf16.msra.mxu0 0
    %100 = vmatprep.subr.bf16.mxu0 0
    %101 = vmatpush1.bf16.msra.mxu0 0
    %102 = vmatprep.subr.bf16.mxu0 0
    %103 = vmatpush1.bf16.msra.mxu0 0
    %104 = vmatprep.subr.bf16.mxu0 0
    %105 = vmatpush1.bf16.msra.mxu0 0
    %106 = vmatprep.mubr.bf16.mxu0 0
    %107 = vmatmul.mubr.bf16.gmra.mrb[0].mxu0 %v72
    %v108 = vpop.f32.mrb[0].mxu0
    %v109 = vadd.f32 %v56, %v108
    %v110 = vpop.f32.mrb[0].mxu0
    %v111 = vpop.f32.mrb[0].mxu0
    %v112 = vadd.f32 %v56, %v111
    %v113 = vpop.f32.mrb[0].mxu0
    %114 = vdwg.mxu0
    %v115 = vadd.f32 %v109, %v44
    %v116 = vadd.f32 %v112, %v45
    %117 = vst.msk [vmem:[#allocation7] sm:$0xff] %vm70, %v115
    %118 = vst.msk [vmem:[#allocation7 + $0x8] sm:$0xff] %vm70, %v116
    // Predicated region
    $region22: #{tpu_custom_call.1} parent=1 // pred_check
      _
    $region23: #{tpu_custom_call.1} parent=1 // pred_check_branch
      %120 = sbr.rel (0) target = $region25
    $region24: #{tpu_custom_call.1} parent=1 // pred_region
      %s122 = ssub.s32 256, 256
      %123 = vsyncadd [#allocation4], %s122
      %s124 = sshll.u32 [#allocation7], 4
      %s125 = int_to_ptr.vmem [resolvable:$true] %s124
      %130 = dma.vmem_to_hbm [thread:$0]  %s125, 256, %s3, [#allocation4], 128, 128, 8
    $region25: #{tpu_custom_call.1} parent=1 // pred_fallthru
      _
    // Predicated region
    $region26: #{tpu_custom_call.1} parent=1 // pred_check
      _
    $region27: #{tpu_custom_call.1} parent=1 // pred_check_branch
      %132 = sbr.rel (0) target = $region29
    $region28: #{tpu_custom_call.1} parent=1 // pred_region
      %133 = dma.done [#allocation4], 256
    $region29: #{tpu_custom_call.1} parent=1 // pred_fallthru
      _
    %134 = vsyncpa [#allocation3], 1
    %135 = vsyncpa [#allocation6], 1
    %136 = vsyncpa [#allocation4], 1

</llo_original>
